<compile_context>
chip_gen: v5e
topology: v5e:2x2
jax: 0.10.0
libtpu: 0.0.40
codegen_flags: <defaults>
</compile_context>

<pallas_src>
import functools

import jax
import jax.numpy as jnp
from jax.experimental import pallas as pl
from jax.experimental.pallas import tpu as pltpu

_LANES = 128
# Below this size a fused XLA `where` beats the pallas_call launch + reshapes.
_SMALL_INPUT_BYTES = 256 * 1024


def _threshold_kernel(x_ref, o_ref, *, threshold, value):
    x = x_ref[...]
    o_ref[...] = jnp.where(x > threshold, x, jnp.asarray(value, x.dtype))


def _choose_cols(n):
    """Largest lane-dense width (multiple of 128) that divides n exactly."""
    for c in (4096, 2048, 1024, 512, 256, 128):
        if n % c == 0:
            return c
    return None  # n is not a multiple of 128


@functools.lru_cache(maxsize=1)
def _chip_config():
    """Per-generation (target_block_bytes, vmem_limit_bytes|None, is_megacore)."""
    kind = ""
    try:
        kind = jax.devices()[0].device_kind.lower().replace(" ", "")
    except Exception:
        pass
    if "v7" in kind or "tpu7" in kind:
        # v7x: ~3.2 TB/s HBM per TC -> big blocks amortize the ~0.35us/step overhead.
        # 6 MiB x 2 bufs x (in + out) = 24 MiB; raise scoped VMEM for headroom
        # (physical VMEM is 64 MiB/TC).  2 TensorCores -> want even, balanced steps.
        return 6 * 1024 * 1024, 40 << 20, True
    if "v6" in kind:
        # v6e: 4 MiB x 2 x 2 = 16 MiB, well inside the 32 MiB default scoped VMEM.
        return 4 * 1024 * 1024, None, False
    # v5e (16 MiB default scoped VMEM, ~0.82 TB/s) and unknown chips: conservative.
    return 2 * 1024 * 1024, None, False


def _threshold_pallas_2d(x2d, threshold, value, inplace):
    rows, cols = x2d.shape
    itemsize = jnp.dtype(x2d.dtype).itemsize
    target_block_bytes, vmem_limit, is_megacore = _chip_config()

    # dtype-aware minimum sublane tile: 8 for f32, 16 for bf16/f16, 32 for int8/fp8.
    sub_min = max(8, 32 // itemsize)

    if rows <= sub_min:
        block_rows = rows  # full-extent block (allowed even if not a multiple of 8)
    else:
        units = pl.cdiv(rows, sub_min)                 # sub_min-row chunks
        total_bytes = rows * cols * itemsize
        steps = max(1, pl.cdiv(total_bytes, target_block_bytes))
        if is_megacore and units >= 2:
            # v7x: even number of near-equal steps so both TensorCores get work.
            steps = max(2, steps + (steps % 2))
        steps = min(steps, units)
        block_rows = min(rows, pl.cdiv(units, steps) * sub_min)

    grid = (pl.cdiv(rows, block_rows),)  # ragged final block handled by Pallas

    kernel = functools.partial(_threshold_kernel, threshold=threshold, value=value)

    n = rows * cols
    cost = pl.CostEstimate(
        flops=n,                       # one compare+select per element
        transcendentals=0,
        bytes_accessed=2 * n * itemsize,
    )

    # TODO(synk): optionally sweep pipeline_mode=pl.Buffered(3) on the input spec on
    # v7x once blocks are this large; expected gain is a few percent at most.
    return pl.pallas_call(
        kernel,
        out_shape=jax.ShapeDtypeStruct((rows, cols), x2d.dtype),
        grid_spec=pltpu.PrefetchScalarGridSpec(
            num_scalar_prefetch=0,
            grid=grid,
            in_specs=[pl.BlockSpec((block_rows, cols), lambda i: (i, 0))],
            out_specs=pl.BlockSpec((block_rows, cols), lambda i: (i, 0)),
        ),
        compiler_params=pltpu.CompilerParams(
            dimension_semantics=("parallel",),
            vmem_limit_bytes=vmem_limit,
        ),
        cost_estimate=cost,
        # Only aliases when the caller asks for it; it is only a win if the caller
        # also donates x (e.g. jax.jit donate_argnums) -- otherwise XLA inserts a
        # defensive copy and "inplace" is slower than out-of-place.
        input_output_aliases=({0: 0} if inplace else {}),
    )(x2d)


def threshold_pallas(x, threshold, value, inplace=False, *,
                     min_pallas_bytes=_SMALL_INPUT_BYTES):
    """out = x where x > threshold else value (PyTorch nn.Threshold forward)."""
    orig_shape = x.shape
    dtype = x.dtype
    n = x.size
    if n == 0:
        return x

    fill = jnp.asarray(value, dtype)
    if n * jnp.dtype(dtype).itemsize < min_pallas_bytes:
        # Tiny tensors: the elementwise select fuses for free in XLA.
        return jnp.where(x > threshold, x, fill)

    cols = _choose_cols(n)
    if cols is None:
        # Total size not a multiple of 128 lanes: a pad -> kernel -> slice round trip
        # would cost ~3 full HBM passes; a single fused XLA select is 1 pass.
        return jnp.where(x > threshold, x, fill)

    x_flat = jnp.ravel(x)  # free for contiguous NCHW input
    rows = n // cols
    out2d = _threshold_pallas_2d(x_flat.reshape(rows, cols), threshold, value, inplace)
    return out2d.reshape(orig_shape)


class Threshold:
    """JAX/Pallas equivalent of the torchexplain Threshold module (forward only)."""

    def __init__(self, threshold, value, inplace=False):
        self.threshold = threshold
        self.value = value
        self.inplace = inplace

    def __call__(self, x):
        return threshold_pallas(x, self.threshold, self.value, self.inplace)


if __name__ == "__main__":
    key = jax.random.PRNGKey(0)
    t, v = 0.1, -1.0

    # 1) Small NCHW input consistent with the module's usage; force the Pallas path.
    x = jax.random.normal(key, (2, 4, 16, 16), dtype=jnp.float32)
    ref = jnp.where(x > t, x, jnp.asarray(v, x.dtype))
    out = jax.block_until_ready(threshold_pallas(x, t, v, min_pallas_bytes=0))
    assert out.shape == x.shape and out.dtype == x.dtype
    assert jnp.allclose(out, ref), "mismatch vs reference (pallas path)"

    # 2) Aliased ("inplace") variant.
    out_ip = jax.block_until_ready(
        threshold_pallas(x, t, v, inplace=True, min_pallas_bytes=0)
    )
    assert jnp.allclose(out_ip, ref), "mismatch vs reference (inplace path)"

    # 3) Moderately sized tensor that takes the default (non-forced) Pallas path.
    k2 = jax.random.PRNGKey(1)
    xb = jax.random.normal(k2, (4, 8, 128, 128), dtype=jnp.float32)  # 2 MiB
    refb = jnp.where(xb > t, xb, jnp.asarray(v, xb.dtype))
    outb = jax.block_until_ready(threshold_pallas(xb, t, v))
    assert jnp.allclose(outb, refb), "mismatch vs reference (large path)"

    # 4) Size not a multiple of 128 lanes -> fused-XLA fallback (no pad/slice passes).
    k3 = jax.random.PRNGKey(2)
    xo = jax.random.normal(k3, (3, 5, 7), dtype=jnp.float32)
    refo = jnp.where(xo > t, xo, jnp.asarray(v, xo.dtype))
    outo = jax.block_until_ready(threshold_pallas(xo, t, v, min_pallas_bytes=0))
    assert jnp.allclose(outo, refo), "mismatch vs reference (ragged fallback)"

    # 5) Module path (small inputs take the fused-XLA fast path).
    mod = Threshold(threshold=t, value=v, inplace=False)
    out_mod = jax.block_until_ready(mod(x))
    assert jnp.allclose(out_mod, ref), "mismatch vs reference (module path)"

    print("KERNEL_OK")
</pallas_src>

<mosaic_0001>
module attributes {stable_mosaic.version = 11 : i64} {
  func.func @_threshold_kernel(%arg0: i32, %arg1: memref<1x2048xf32, #tpu.memory_space<vmem>>, %arg2: memref<1x2048xf32, #tpu.memory_space<vmem>>) attributes {dimension_semantics = [#tpu.dimension_semantics<parallel>], iteration_bounds = array<i64: 1>, scalar_prefetch = 0 : i64, scratch_operands = 0 : i64, tpu.core_type = #tpu.core_type<tc>, window_params = [{transform_indices = @transform_0, window_bounds = array<i64: 1, 2048>}, {transform_indices = @transform_1, window_bounds = array<i64: 1, 2048>}]} {
    %c0 = arith.constant 0 : index
    %c0_0 = arith.constant 0 : index
    %0 = vector.load %arg1[%c0, %c0_0] : memref<1x2048xf32, #tpu.memory_space<vmem>>, vector<1x2048xf32>
    %cst = arith.constant 1.000000e-01 : f32
    %1 = vector.broadcast %cst : f32 to vector<1x2048xf32>
    %2 = arith.cmpf ogt, %0, %1 : vector<1x2048xf32>
    %cst_1 = arith.constant -1.000000e+00 : f32
    %3 = vector.broadcast %cst_1 : f32 to vector<1x2048xf32>
    %4 = arith.select %2, %0, %3 : vector<1x2048xi1>, vector<1x2048xf32>
    %c0_2 = arith.constant 0 : index
    %c0_3 = arith.constant 0 : index
    %5 = vector.load %arg2[%c0_2, %c0_3] : memref<1x2048xf32, #tpu.memory_space<vmem>>, vector<1x2048xf32>
    tpu.vector_store %arg2[%c0_2, %c0_3], %4 {strides = array<i32>} : memref<1x2048xf32, #tpu.memory_space<vmem>>, vector<1x2048xf32>,
    return
  }
  func.func @transform_0(%arg0: i32) -> (i32, i32) {
    %c0_i32 = arith.constant 0 : i32
    %c0_i32_0 = arith.constant 0 : i32
    return %arg0, %c0_i32 : i32, i32
  }
  func.func @transform_1(%arg0: i32) -> (i32, i32) {
    %c0_i32 = arith.constant 0 : i32
    %c0_i32_0 = arith.constant 0 : i32
    return %arg0, %c0_i32 : i32, i32
  }
}

</mosaic_0001>

<llo_original>
// kernel: tpu_custom_call.1
$region0: #{tpu_custom_call.1}
  #allocation0 [shape = 'u32[]', space=smem, size = 0x4, offset = 0x4, fixed_abs, tag = 'smem constant byte address 0x4 - core index']
  #allocation1 [shape = 'u32[72,128]{1,0:T(1,128)}', space=vmem, size = 0x9000, scoped, tag = 'internal scratch']
  %s0 = inlined_call_operand.hbm [shape: f32[1,2048], index: 0, kind: input, shape index: {}]
  %s1 = inlined_call_operand.hbm [shape: f32[1,2048], index: 1, kind: output, shape index: {}]
  %s2 = sld [smem:[#allocation0]]
  $region18: #{tpu_custom_call.1} parent=0
    _
  %s4 = ssub.s32 1, %s2
  %s5 = scalar_select 0, %s4, %s2
  $region1: #{tpu_custom_call.1} parent=0
    #allocation2 [shape = 'u8[8192]{0}', space=vmem, size = 0x2000, scoped, tag = 'input window, operand 0, single buffered']
    #allocation3 [shape = 's32[1]{0}', space=sflag, size = 0x4, scoped, tag = 'scoped memory for tpu_custom_call.1']
    #allocation4 [shape = 's32[1]{0}', space=sflag, size = 0x4, scoped, tag = 'scoped memory for tpu_custom_call.1']
    #allocation5 [shape = 'u8[8192]{0}', space=vmem, size = 0x2000, scoped, tag = 'output window, operand 0, single buffered']
    %6 = vsyncpa [#allocation3], 0
    %7 = vsyncpa [#allocation4], 0
    // Predicated region
    $region2: #{tpu_custom_call.1} parent=1 // pred_check
      _
    $region3: #{tpu_custom_call.1} parent=1 // pred_check_branch
      %9 = sbr.rel (0) target = $region5
    $region4: #{tpu_custom_call.1} parent=1 // pred_region
      %11 = vsyncadd [#allocation3], 0
      %s13 = sshll.u32 %s0, 4
      %s14 = int_to_ptr.hbm [resolvable:$true] %s13
      %s15 = sshll.u32 [#allocation2], 4
      %s16 = int_to_ptr.vmem [resolvable:$true] %s15
      %18 = dma.hbm_to_vmem [thread:$0]  %s14, 256, %s16, [#allocation3]
    $region5: #{tpu_custom_call.1} parent=1 // pred_fallthru
      _
    // Predicated region
    $region6: #{tpu_custom_call.1} parent=1 // pred_check
      _
    $region7: #{tpu_custom_call.1} parent=1 // pred_check_branch
      %20 = sbr.rel (0) target = $region9
    $region8: #{tpu_custom_call.1} parent=1 // pred_region
      %22 = dma.done [#allocation3], 256
    $region9: #{tpu_custom_call.1} parent=1 // pred_fallthru
      _
    %v23 = vld [vmem:[#allocation2] sm:$0xff]
    %v24 = vld [vmem:[#allocation2 + $0x8] sm:$0xff]
    %vm25 = vcmp.gt.f32.partialorder %v23, 0.1
    %vm26 = vcmp.gt.f32.partialorder %v24, 0.1
    %v27 = vsel %vm25, %v23, -1.0
    %v28 = vsel %vm26, %v24, -1.0
    %29 = vst [vmem:[#allocation5] sm:$0xff] %v27
    %30 = vst [vmem:[#allocation5 + $0x8] sm:$0xff] %v28
    // Predicated region
    $region10: #{tpu_custom_call.1} parent=1 // pred_check
      _
    $region11: #{tpu_custom_call.1} parent=1 // pred_check_branch
      %32 = sbr.rel (0) target = $region13
    $region12: #{tpu_custom_call.1} parent=1 // pred_region
      %34 = vsyncadd [#allocation4], 0
      %s36 = sshll.u32 [#allocation5], 4
      %s37 = int_to_ptr.vmem [resolvable:$true] %s36
      %s38 = sshll.u32 %s1, 4
      %s39 = int_to_ptr.hbm [resolvable:$true] %s38
      %41 = dma.vmem_to_hbm [thread:$0]  %s37, 256, %s39, [#allocation4]
    $region13: #{tpu_custom_call.1} parent=1 // pred_fallthru
      _
    // Predicated region
    $region14: #{tpu_custom_call.1} parent=1 // pred_check
      _
    $region15: #{tpu_custom_call.1} parent=1 // pred_check_branch
      %43 = sbr.rel (0) target = $region17
    $region16: #{tpu_custom_call.1} parent=1 // pred_region
      %45 = dma.done [#allocation4], 256
    $region17: #{tpu_custom_call.1} parent=1 // pred_fallthru
      _
    %46 = vsyncpa [#allocation3], 1
    %47 = vsyncpa [#allocation4], 1

</llo_original>
